<compile_context>
chip_gen: v5e
topology: v5e:2x2
jax: 0.10.0
libtpu: 0.0.40
codegen_flags: <defaults>
</compile_context>

<pallas_src>
import jax
import jax.numpy as jnp
from jax.experimental import pallas as pl
from jax.experimental.pallas import tpu as pltpu


def _round_up(a, m):
    return (a + m - 1) // m * m


def _dcd_kernel(x_ref, w1_ref, b1_ref, w23_ref, b23_ref, o_ref):
    # fc1 + ReLU.  K = D_in (unpadded, 40); MXU pads K internally, output is lane-dense.
    h1 = jnp.dot(x_ref[...], w1_ref[...], preferred_element_type=jnp.float32) + b1_ref[...]
    h1 = jnp.maximum(h1, 0.0)
    # Fused fc2 + out head: logits = h1 @ (w2 @ w3) + (b2 @ w3 + b3); exactly n_out cols,
    # so no padded-lane masking is required before the softmax.
    logits = jnp.dot(h1, w23_ref[...], preferred_element_type=jnp.float32) + b23_ref[...]
    # Softmax over the class axis (dim=1 of the PyTorch module).
    m = jnp.max(logits, axis=-1, keepdims=True)
    e = jnp.exp(logits - m)
    denom = jnp.sum(e, axis=-1, keepdims=True)
    # EUP approximate reciprocal + one Newton-Raphson step (full f32 accuracy, no VPU divide).
    r = pl.reciprocal(denom, approx=True)
    r = r * (2.0 - denom * r)
    o_ref[...] = e * r


def prepare_params(params):
    """Fold fc2 into the out head and lane-pad the hidden dim ONCE (reuse across calls)."""
    w1, b1, w2, b2, w3, b3 = params
    d_in, h = w1.shape
    n_out = w3.shape[1]
    h_pad = _round_up(max(h, 128), 128)

    # Algebraic fusion (no activation between fc2 and out): exact up to fp reassociation.
    w23 = w2 @ w3                      # [H, n_out]
    b23 = b2 @ w3 + b3                 # [1, n_out]

    # Only the hidden dim (VMEM-resident intermediate) is lane-padded; x / output stay unpadded.
    w1p = jnp.zeros((d_in, h_pad), w1.dtype).at[:, :h].set(w1)
    b1p = jnp.zeros((1, h_pad), b1.dtype).at[:, :h].set(b1)
    w23p = jnp.zeros((h_pad, n_out), w23.dtype).at[:h, :].set(w23)

    return (w1p, b1p, w23p, b23), (d_in, h_pad, n_out)


def dcd_forward(x, prepared, *, batch_tile=512):
    (w1p, b1p, w23p, b23), (d_in, h_pad, n_out) = prepared
    B, D_in = x.shape
    assert D_in == d_in

    # Batch tiling: big tiles (better HBM roofline), clamped for tiny batches and kept a
    # multiple of 8; for mid/large batches keep >=2 grid steps so both v7x TCs get work.
    tb = min(batch_tile, _round_up(B, 8))
    if B > 256:
        tb = min(tb, _round_up(-(-B // 2), 8))
    b_pad = _round_up(B, tb)

    # Only batch-pad (tiny, and only when needed); never lane-pad x in HBM.
    x_in = x if b_pad == B else jnp.zeros((b_pad, D_in), x.dtype).at[:B].set(x)

    grid = (b_pad // tb,)
    out = pl.pallas_call(
        _dcd_kernel,
        out_shape=jax.ShapeDtypeStruct((b_pad, n_out), jnp.float32),
        grid_spec=pltpu.PrefetchScalarGridSpec(
            num_scalar_prefetch=0,
            grid=grid,
            in_specs=[
                pl.BlockSpec((tb, D_in), lambda i: (i, 0)),      # x tile (pipelined, unpadded lanes)
                pl.BlockSpec((d_in, h_pad), lambda i: (0, 0)),   # w1 (VMEM-resident)
                pl.BlockSpec((1, h_pad), lambda i: (0, 0)),      # b1
                pl.BlockSpec((h_pad, n_out), lambda i: (0, 0)),  # fused w2 @ w3
                pl.BlockSpec((1, n_out), lambda i: (0, 0)),      # fused bias
            ],
            out_specs=pl.BlockSpec((tb, n_out), lambda i: (i, 0)),  # narrow writeback
        ),
        compiler_params=pltpu.CompilerParams(
            dimension_semantics=("parallel",),  # shard batch grid across v7x's 2 TCs
        ),
    )(x_in, w1p, b1p, w23p, b23)

    return out if b_pad == B else out[:B]


def init_params(key, D_in=40, H=64, n_out=4):
    # Deterministic synthetic init (PyTorch-style uniform bounds, not a checkpoint).
    ks = jax.random.split(key, 6)

    def lin(kw, kb, fan_in, fan_out):
        bound = 1.0 / jnp.sqrt(fan_in)
        w = jax.random.uniform(kw, (fan_in, fan_out), jnp.float32, -bound, bound)
        b = jax.random.uniform(kb, (1, fan_out), jnp.float32, -bound, bound)
        return w, b

    w1, b1 = lin(ks[0], ks[1], D_in, H)
    w2, b2 = lin(ks[2], ks[3], H, H)
    w3, b3 = lin(ks[4], ks[5], H, n_out)
    return (w1, b1, w2, b2, w3, b3)


def dcd_reference(x, params):
    # Unfused reference matching the PyTorch module exactly.
    w1, b1, w2, b2, w3, b3 = params
    h1 = jnp.maximum(x @ w1 + b1, 0.0)
    h2 = h1 @ w2 + b2
    return jax.nn.softmax(h2 @ w3 + b3, axis=1)


if __name__ == "__main__":
    key = jax.random.PRNGKey(0)
    k_x1, k_x2, k_p = jax.random.split(key, 3)

    D_in, H, n_out = 40, 64, 4
    params = init_params(k_p, D_in=D_in, H=H, n_out=n_out)
    prepared = prepare_params(params)   # fuse + pad once, reuse across forwards

    # Case 1: toy batch matching the module's typical use (single grid step, no padding).
    B1 = 8
    x1 = jax.random.normal(k_x1, (B1, D_in), dtype=jnp.float32)
    out1 = jax.block_until_ready(dcd_forward(x1, prepared))
    ref1 = dcd_reference(x1, params)
    assert out1.shape == (B1, n_out)
    assert jnp.allclose(out1, ref1, atol=1e-4, rtol=1e-4)
    assert jnp.allclose(jnp.sum(out1, axis=1), 1.0, atol=1e-4)

    # Case 2: larger batch exercising the batch grid + row padding.
    B2 = 300
    x2 = jax.random.normal(k_x2, (B2, D_in), dtype=jnp.float32)
    # Default tile (>=2 grid steps for v7x megacore)...
    out2 = jax.block_until_ready(dcd_forward(x2, prepared))
    ref2 = dcd_reference(x2, params)
    assert out2.shape == (B2, n_out)
    assert jnp.allclose(out2, ref2, atol=1e-4, rtol=1e-4)
    assert jnp.allclose(jnp.sum(out2, axis=1), 1.0, atol=1e-4)
    # ...and a smaller tile exercising 3 grid steps (300 -> 384 rows).
    out3 = jax.block_until_ready(dcd_forward(x2, prepared, batch_tile=128))
    assert out3.shape == (B2, n_out)
    assert jnp.allclose(out3, ref2, atol=1e-4, rtol=1e-4)

    print("KERNEL_OK")
</pallas_src>

<mosaic_0001>
module attributes {stable_mosaic.version = 11 : i64} {
  func.func @_dcd_kernel(%arg0: i32, %arg1: memref<8x40xf32, #tpu.memory_space<vmem>>, %arg2: memref<40x128xf32, #tpu.memory_space<vmem>>, %arg3: memref<1x128xf32, #tpu.memory_space<vmem>>, %arg4: memref<128x4xf32, #tpu.memory_space<vmem>>, %arg5: memref<1x4xf32, #tpu.memory_space<vmem>>, %arg6: memref<8x4xf32, #tpu.memory_space<vmem>>) attributes {dimension_semantics = [#tpu.dimension_semantics<parallel>], iteration_bounds = array<i64: 1>, scalar_prefetch = 0 : i64, scratch_operands = 0 : i64, tpu.core_type = #tpu.core_type<tc>, window_params = [{transform_indices = @transform_0, window_bounds = array<i64: 8, 40>}, {pipeline_mode = #tpu.pipeline_mode<synchronous>, transform_indices = @transform_1, window_bounds = array<i64: 40, 128>}, {pipeline_mode = #tpu.pipeline_mode<synchronous>, transform_indices = @transform_2, window_bounds = array<i64: 1, 128>}, {pipeline_mode = #tpu.pipeline_mode<synchronous>, transform_indices = @transform_3, window_bounds = array<i64: 128, 4>}, {pipeline_mode = #tpu.pipeline_mode<synchronous>, transform_indices = @transform_4, window_bounds = array<i64: 1, 4>}, {transform_indices = @transform_5, window_bounds = array<i64: 8, 4>}]} {
    %c0 = arith.constant 0 : index
    %c0_0 = arith.constant 0 : index
    %0 = vector.load %arg1[%c0, %c0_0] : memref<8x40xf32, #tpu.memory_space<vmem>>, vector<8x40xf32>
    %c0_1 = arith.constant 0 : index
    %c0_2 = arith.constant 0 : index
    %1 = vector.load %arg2[%c0_1, %c0_2] : memref<40x128xf32, #tpu.memory_space<vmem>>, vector<40x128xf32>
    %cst = arith.constant dense<0.000000e+00> : vector<8x128xf32>
    %2 = tpu.matmul %0, %1, %cst {dimension_numbers = #tpu.dot_dimension_numbers<[1], [0], [0], [1], [0, 0, 1, 1], [], []>} : vector<8x40xf32>, vector<40x128xf32>, vector<8x128xf32> -> vector<8x128xf32>
    %c0_3 = arith.constant 0 : index
    %c0_4 = arith.constant 0 : index
    %3 = vector.load %arg3[%c0_3, %c0_4] : memref<1x128xf32, #tpu.memory_space<vmem>>, vector<1x128xf32>
    %4 = vector.broadcast %3 : vector<1x128xf32> to vector<8x128xf32>
    %5 = arith.addf %2, %4 : vector<8x128xf32>
    %cst_5 = arith.constant 0.000000e+00 : f32
    %6 = vector.broadcast %cst_5 : f32 to vector<8x128xf32>
    %7 = arith.maximumf %5, %6 : vector<8x128xf32>
    %c0_6 = arith.constant 0 : index
    %c0_7 = arith.constant 0 : index
    %8 = vector.load %arg4[%c0_6, %c0_7] : memref<128x4xf32, #tpu.memory_space<vmem>>, vector<128x4xf32>
    %cst_8 = arith.constant dense<0.000000e+00> : vector<8x4xf32>
    %9 = tpu.matmul %7, %8, %cst_8 {dimension_numbers = #tpu.dot_dimension_numbers<[1], [0], [0], [1], [0, 0, 1, 1], [], []>} : vector<8x128xf32>, vector<128x4xf32>, vector<8x4xf32> -> vector<8x4xf32>
    %c0_9 = arith.constant 0 : index
    %c0_10 = arith.constant 0 : index
    %10 = vector.load %arg5[%c0_9, %c0_10] : memref<1x4xf32, #tpu.memory_space<vmem>>, vector<1x4xf32>
    %11 = vector.broadcast %10 : vector<1x4xf32> to vector<8x4xf32>
    %12 = arith.addf %9, %11 : vector<8x4xf32>
    %cst_11 = arith.constant dense<0xFF800000> : vector<8xf32>
    %13 = vector.multi_reduction <maximumf>, %12, %cst_11 [1] : vector<8x4xf32> to vector<8xf32>
    %14 = vector.shape_cast %13 : vector<8xf32> to vector<8x1xf32>
    %15 = vector.broadcast %14 : vector<8x1xf32> to vector<8x4xf32>
    %16 = arith.subf %12, %15 : vector<8x4xf32>
    %17 = math.exp %16 : vector<8x4xf32>
    %cst_12 = arith.constant dense<0.000000e+00> : vector<8xf32>
    %18 = vector.multi_reduction <add>, %17, %cst_12 [1] : vector<8x4xf32> to vector<8xf32>
    %19 = vector.shape_cast %18 : vector<8xf32> to vector<8x1xf32>
    %20 = tpu.reciprocal %19 {approx = true} : vector<8x1xf32> -> vector<8x1xf32>
    %21 = arith.mulf %19, %20 : vector<8x1xf32>
    %cst_13 = arith.constant 2.000000e+00 : f32
    %22 = vector.broadcast %cst_13 : f32 to vector<8x1xf32>
    %23 = arith.subf %22, %21 : vector<8x1xf32>
    %24 = arith.mulf %20, %23 : vector<8x1xf32>
    %25 = vector.broadcast %24 : vector<8x1xf32> to vector<8x4xf32>
    %26 = arith.mulf %17, %25 : vector<8x4xf32>
    %c0_14 = arith.constant 0 : index
    %c0_15 = arith.constant 0 : index
    %27 = vector.load %arg6[%c0_14, %c0_15] : memref<8x4xf32, #tpu.memory_space<vmem>>, vector<8x4xf32>
    tpu.vector_store %arg6[%c0_14, %c0_15], %26 {strides = array<i32>} : memref<8x4xf32, #tpu.memory_space<vmem>>, vector<8x4xf32>,
    return
  }
  func.func @transform_0(%arg0: i32) -> (i32, i32) {
    %c0_i32 = arith.constant 0 : i32
    %c0_i32_0 = arith.constant 0 : i32
    return %arg0, %c0_i32 : i32, i32
  }
  func.func @transform_1(%arg0: i32) -> (i32, i32) {
    %c0_i32 = arith.constant 0 : i32
    %c0_i32_0 = arith.constant 0 : i32
    %c0_i32_1 = arith.constant 0 : i32
    return %c0_i32, %c0_i32_0 : i32, i32
  }
  func.func @transform_2(%arg0: i32) -> (i32, i32) {
    %c0_i32 = arith.constant 0 : i32
    %c0_i32_0 = arith.constant 0 : i32
    %c0_i32_1 = arith.constant 0 : i32
    return %c0_i32, %c0_i32_0 : i32, i32
  }
  func.func @transform_3(%arg0: i32) -> (i32, i32) {
    %c0_i32 = arith.constant 0 : i32
    %c0_i32_0 = arith.constant 0 : i32
    %c0_i32_1 = arith.constant 0 : i32
    return %c0_i32, %c0_i32_0 : i32, i32
  }
  func.func @transform_4(%arg0: i32) -> (i32, i32) {
    %c0_i32 = arith.constant 0 : i32
    %c0_i32_0 = arith.constant 0 : i32
    %c0_i32_1 = arith.constant 0 : i32
    return %c0_i32, %c0_i32_0 : i32, i32
  }
  func.func @transform_5(%arg0: i32) -> (i32, i32) {
    %c0_i32 = arith.constant 0 : i32
    %c0_i32_0 = arith.constant 0 : i32
    return %arg0, %c0_i32 : i32, i32
  }
}

</mosaic_0001>

<llo_original>
// kernel: tpu_custom_call.1
$region0: #{tpu_custom_call.1}
  #allocation0 [shape = 'u32[]', space=smem, size = 0x4, offset = 0x4, fixed_abs, tag = 'smem constant byte address 0x4 - core index']
  #allocation1 [shape = 'u32[72,128]{1,0:T(1,128)}', space=vmem, size = 0x9000, scoped, tag = 'internal scratch']
  %s0 = inlined_call_operand.vmem [shape: f32[8,40], index: 0, kind: input, shape index: {}]
  %s1 = inlined_call_operand.vmem [shape: f32[40,128], index: 1, kind: input, shape index: {}]
  %s2 = inlined_call_operand.vmem [shape: f32[1,128], index: 2, kind: input, shape index: {}]
  %s3 = inlined_call_operand.vmem [shape: f32[128,4], index: 3, kind: input, shape index: {}]
  %s4 = inlined_call_operand.vmem [shape: f32[1,4], index: 4, kind: input, shape index: {}]
  %s5 = inlined_call_operand.vmem [shape: f32[8,4], index: 5, kind: output, shape index: {}]
  %s6 = sld [smem:[#allocation0]]
  $region30: #{tpu_custom_call.1} parent=0
    _
  %s8 = ssub.s32 1, %s6
  %s9 = scalar_select 0, %s8, %s6
  // Predicated region
  $region2: #{tpu_custom_call.1} parent=0 // pred_check
    _
  $region3: #{tpu_custom_call.1} parent=0 // pred_check_branch
    %11 = sbr.rel (0) target = $region5
  $region4: #{tpu_custom_call.1} parent=0 // pred_region
    _
  $region5: #{tpu_custom_call.1} parent=0 // pred_fallthru
    _
  // Predicated region
  $region6: #{tpu_custom_call.1} parent=0 // pred_check
    _
  $region7: #{tpu_custom_call.1} parent=0 // pred_check_branch
    %13 = sbr.rel (0) target = $region9
  $region8: #{tpu_custom_call.1} parent=0 // pred_region
    _
  $region9: #{tpu_custom_call.1} parent=0 // pred_fallthru
    _
  // Predicated region
  $region10: #{tpu_custom_call.1} parent=0 // pred_check
    _
  $region11: #{tpu_custom_call.1} parent=0 // pred_check_branch
    %15 = sbr.rel (0) target = $region13
  $region12: #{tpu_custom_call.1} parent=0 // pred_region
    _
  $region13: #{tpu_custom_call.1} parent=0 // pred_fallthru
    _
  // Predicated region
  $region14: #{tpu_custom_call.1} parent=0 // pred_check
    _
  $region15: #{tpu_custom_call.1} parent=0 // pred_check_branch
    %17 = sbr.rel (0) target = $region17
  $region16: #{tpu_custom_call.1} parent=0 // pred_region
    _
  $region17: #{tpu_custom_call.1} parent=0 // pred_fallthru
    _
  // Predicated region
  $region18: #{tpu_custom_call.1} parent=0 // pred_check
    _
  $region19: #{tpu_custom_call.1} parent=0 // pred_check_branch
    %19 = sbr.rel (0) target = $region21
  $region20: #{tpu_custom_call.1} parent=0 // pred_region
    _
  $region21: #{tpu_custom_call.1} parent=0 // pred_fallthru
    _
  %v20 = vld [vmem:[%s0] sm:$0xff]
  %v21 = vld [vmem:[%s1] sm:$0xff]
  %v22 = vld [vmem:[%s1 + $0x8] sm:$0xff]
  %v23 = vld [vmem:[%s1 + $0x10] sm:$0xff]
  %v24 = vld [vmem:[%s1 + $0x18] sm:$0xff]
  %v25 = vld [vmem:[%s1 + $0x20] sm:$0xff]
  %v26 = vld [vmem:[%s2] sm:$0x1]
  %v28 = vperm.slane %v26, 0
  %vm30 = vcmask 326656
  %v32 = vsel %vm30, %v20, 0
  %34 = vmatpush.msra.mxu0 0.0
  %35 = vmatpush.msra.mxu0 0.0
  %36 = vmatpush.msra.mxu0 0.0
  %37 = vmatpush.msra.mxu0 0.0
  %38 = vmatpush.msra.mxu0 0.0
  %39 = vmatpush.msra.mxu0 0.0
  %40 = vmatpush.msra.mxu0 0.0
  %41 = vmatpush.msra.mxu0 0.0
  %42 = vmatpush.msra.mxu0 0.0
  %43 = vmatpush.msra.mxu0 0.0
  %44 = vmatpush.msra.mxu0 0.0
  %45 = vmatpush.msra.mxu0 %v25
  %46 = vmatpush.msra.mxu0 %v24
  %47 = vmatpush.msra.mxu0 %v23
  %48 = vmatpush.msra.mxu0 %v22
  %49 = vmatpush.msra.mxu0 %v21
  %50 = vmatmul.f32.gmra.mxu0 %v32
  %v51 = vpop.f32.mrf.mxu0
  %v52 = vadd.f32 %v28, %v51
  %53 = vdwg.mxu0
  %v54 = vmax.f32 %v52, 0.0
  %v55 = vld [vmem:[%s3] sm:$0xff]
  %v56 = vld [vmem:[%s3 + $0x8] sm:$0xff]
  %v57 = vld [vmem:[%s3 + $0x10] sm:$0xff]
  %v58 = vld [vmem:[%s3 + $0x18] sm:$0xff]
  %v59 = vld [vmem:[%s3 + $0x20] sm:$0xff]
  %v60 = vld [vmem:[%s3 + $0x28] sm:$0xff]
  %v61 = vld [vmem:[%s3 + $0x30] sm:$0xff]
  %v62 = vld [vmem:[%s3 + $0x38] sm:$0xff]
  %v63 = vld [vmem:[%s3 + $0x40] sm:$0xff]
  %v64 = vld [vmem:[%s3 + $0x48] sm:$0xff]
  %v65 = vld [vmem:[%s3 + $0x50] sm:$0xff]
  %v66 = vld [vmem:[%s3 + $0x58] sm:$0xff]
  %v67 = vld [vmem:[%s3 + $0x60] sm:$0xff]
  %v68 = vld [vmem:[%s3 + $0x68] sm:$0xff]
  %v69 = vld [vmem:[%s3 + $0x70] sm:$0xff]
  %v70 = vld [vmem:[%s3 + $0x78] sm:$0xff]
  %v71 = vld [vmem:[%s4] sm:$0x1]
  %v73 = vperm.slane %v71, 0
  %75 = vmatpush.msra.mxu0 %v70
  %76 = vmatpush.msra.mxu0 %v69
  %77 = vmatpush.msra.mxu0 %v68
  %78 = vmatpush.msra.mxu0 %v67
  %79 = vmatpush.msra.mxu0 %v66
  %80 = vmatpush.msra.mxu0 %v65
  %81 = vmatpush.msra.mxu0 %v64
  %82 = vmatpush.msra.mxu0 %v63
  %83 = vmatpush.msra.mxu0 %v62
  %84 = vmatpush.msra.mxu0 %v61
  %85 = vmatpush.msra.mxu0 %v60
  %86 = vmatpush.msra.mxu0 %v59
  %87 = vmatpush.msra.mxu0 %v58
  %88 = vmatpush.msra.mxu0 %v57
  %89 = vmatpush.msra.mxu0 %v56
  %90 = vmatpush.msra.mxu0 %v55
  %91 = vmatmul.f32.gmra.mxu0 %v54
  %v92 = vpop.f32.mrf.mxu0
  %v93 = vadd.f32 %v73, %v92
  %94 = vdwg.mxu0
  %vm95 = vcmask 31744
  %v96 = vsel %vm95, %v93, -inf
  %97 = vmax.xlane.f32.xlu0 %v96
  %v98 = vpop.xlane.xlu0 %97
  %v99 = vsub.f32 %v93, %v98
  %v100 = vmul.f32 %v99, 1.442695
  %v101 = vpow.pop %v100
  %v102 = vsel %vm95, %v101, 0.0
  %103 = vadd.xlane.f32.xlu0 %v102
  %v104 = vpop.xlane.xlu0 %103
  %v105 = vrcp.pop %v104
  %v106 = vmul.f32 %v104, %v105
  %v107 = vsub.f32 2.0, %v106
  %v108 = vmul.f32 %v105, %v107
  %v109 = vmul.f32 %v101, %v108
  %110 = vst.msk [vmem:[%s5] sm:$0xff] %vm95, %v109
  // Predicated region
  $region22: #{tpu_custom_call.1} parent=0 // pred_check
    _
  $region23: #{tpu_custom_call.1} parent=0 // pred_check_branch
    %112 = sbr.rel (0) target = $region25
  $region24: #{tpu_custom_call.1} parent=0 // pred_region
    _
  $region25: #{tpu_custom_call.1} parent=0 // pred_fallthru
    _
  // Predicated region
  $region26: #{tpu_custom_call.1} parent=0 // pred_check
    _
  $region27: #{tpu_custom_call.1} parent=0 // pred_check_branch
    %114 = sbr.rel (0) target = $region29
  $region28: #{tpu_custom_call.1} parent=0 // pred_region
    _
  $region29: #{tpu_custom_call.1} parent=0 // pred_fallthru
    _

</llo_original>
